<compile_context>
chip_gen: v6e
topology: v6e:2x2x1
jax: 0.10.0
libtpu: 0.0.40
codegen_flags: <defaults>
</compile_context>

<pallas_src>
import numpy as np
import jax
import jax.numpy as jnp
from jax import lax
from jax.experimental import pallas as pl
from jax.experimental.pallas import tpu as pltpu


# ---------------------------------------------------------------------------
# Kernel bodies
# ---------------------------------------------------------------------------

def _sdpa_body(q_ref, k_ref, v_ref, mask_ref, out_ref, attn_ref, *,
               inv_temperature, dropout_p, seed, mxu_dtype):
    """K/V resident across Lk; one (block_b, block_q) query tile per grid step."""
    q = q_ref[...]                        # (TB, TQ, D)
    k = k_ref[...]                        # (TB, Lk, D)
    v = v_ref[...]                        # (TB, Lk, Dv)

    # Fold 1/temperature into q: TB*TQ*D multiplies instead of TB*TQ*Lk.
    qs = q * jnp.asarray(inv_temperature, q.dtype)

    if mxu_dtype is not None:
        qs = qs.astype(mxu_dtype)
        k = k.astype(mxu_dtype)
        v = v.astype(mxu_dtype)

    # scores = q @ k^T contracting the last dims (no k.T relayout); f32 MXU accumulation.
    scores = jnp.einsum("bqd,bkd->bqk", qs, k, preferred_element_type=jnp.float32)

    if mask_ref is not None:
        # masked_fill(attn, mask, -inf); fully-masked rows produce NaN, same as torch.
        scores = jnp.where(mask_ref[...] != 0, -jnp.inf, scores)

    # Numerically stable softmax over the last axis (torch dim=2).
    scores = scores - jnp.max(scores, axis=-1, keepdims=True)
    e = jnp.exp(scores)
    denom = jnp.sum(e, axis=-1, keepdims=True)

    if attn_ref is not None:
        # Exact reciprocal for the returned probabilities (closest torch-softmax parity).
        attn = e / denom
        attn_ref[...] = attn.astype(attn_ref.dtype)
    else:
        # Fast path: EUP approximate reciprocal, off the VALU critical path.
        attn = e * pl.reciprocal(denom, approx=True)

    p = attn                              # torch returns PRE-dropout attn; drop only for the bmm
    if dropout_p > 0.0:
        # Independent PRNG stream per (batch-block, q-tile) grid point.
        pltpu.prng_seed(seed + pl.program_id(0) * pl.num_programs(1) + pl.program_id(1))
        bits = pltpu.bitcast(pltpu.prng_random_bits(p.shape), jnp.uint32)
        threshold = jnp.uint32(min(int(dropout_p * (1 << 32)), (1 << 32) - 1))
        keep = bits >= threshold          # raw uint32 compare, no int->float convert
        p = jnp.where(keep, p * (1.0 / (1.0 - dropout_p)), 0.0)

    out = jnp.einsum("bqk,bkd->bqd", p.astype(v.dtype), v,
                     preferred_element_type=jnp.float32)
    out_ref[...] = out.astype(out_ref.dtype)


def _flash_body(q_ref, k_ref, v_ref, mask_ref, out_ref, m_sc, l_sc, acc_sc, *,
                inv_temperature, dropout_p, seed, mxu_dtype):
    """Online-softmax (flash) body: Lk tiled on the last ("arbitrary") grid axis."""
    j = pl.program_id(2)

    @pl.when(j == 0)
    def _():
        m_sc[...] = jnp.full_like(m_sc, -jnp.inf)
        l_sc[...] = jnp.zeros_like(l_sc)
        acc_sc[...] = jnp.zeros_like(acc_sc)

    q = q_ref[0]                          # (TQ, D)
    k = k_ref[0]                          # (TK, D)
    v = v_ref[0]                          # (TK, Dv)
    qs = q * jnp.asarray(inv_temperature, q.dtype)
    if mxu_dtype is not None:
        qs = qs.astype(mxu_dtype)
        k = k.astype(mxu_dtype)
        v = v.astype(mxu_dtype)

    s = lax.dot_general(qs, k, (((1,), (1,)), ((), ())),
                        preferred_element_type=jnp.float32)      # (TQ, TK)
    if mask_ref is not None:
        s = jnp.where(mask_ref[0] != 0, -jnp.inf, s)

    m_prev = m_sc[...]
    m_new = jnp.maximum(m_prev, jnp.max(s, axis=-1, keepdims=True))
    # Rows fully masked so far have m_new == -inf; substitute 0 in the exps so those rows
    # contribute exactly 0 (a fully-masked row ends with l == 0 -> 0 * (1/0) -> NaN,
    # matching torch's masked_fill(-inf) + softmax).
    m_safe = jnp.where(m_new == -jnp.inf, 0.0, m_new)
    alpha = jnp.exp(m_prev - m_safe)
    p = jnp.exp(s - m_safe)

    l_sc[...] = alpha * l_sc[...] + jnp.sum(p, axis=-1, keepdims=True)

    pv = p
    if dropout_p > 0.0:
        nq = pl.num_programs(1)
        nk = pl.num_programs(2)
        pltpu.prng_seed(seed + (pl.program_id(0) * nq + pl.program_id(1)) * nk + j)
        bits = pltpu.bitcast(pltpu.prng_random_bits(p.shape), jnp.uint32)
        threshold = jnp.uint32(min(int(dropout_p * (1 << 32)), (1 << 32) - 1))
        keep = bits >= threshold
        pv = jnp.where(keep, p * (1.0 / (1.0 - dropout_p)), 0.0)

    acc_sc[...] = alpha * acc_sc[...] + jnp.dot(pv.astype(v.dtype), v,
                                                preferred_element_type=jnp.float32)
    m_sc[...] = m_new

    @pl.when(j == pl.num_programs(2) - 1)
    def _():
        out = acc_sc[...] * pl.reciprocal(l_sc[...], approx=True)
        out_ref[0] = out.astype(out_ref.dtype)


def _make_sdpa_kernel(has_mask, return_attn, **static):
    if has_mask and return_attn:
        def kernel(q, k, v, m, o, a):
            _sdpa_body(q, k, v, m, o, a, **static)
    elif has_mask:
        def kernel(q, k, v, m, o):
            _sdpa_body(q, k, v, m, o, None, **static)
    elif return_attn:
        def kernel(q, k, v, o, a):
            _sdpa_body(q, k, v, None, o, a, **static)
    else:
        def kernel(q, k, v, o):
            _sdpa_body(q, k, v, None, o, None, **static)
    return kernel


def _make_flash_kernel(has_mask, **static):
    if has_mask:
        def kernel(q, k, v, m, o, m_sc, l_sc, acc_sc):
            _flash_body(q, k, v, m, o, m_sc, l_sc, acc_sc, **static)
    else:
        def kernel(q, k, v, o, m_sc, l_sc, acc_sc):
            _flash_body(q, k, v, None, o, m_sc, l_sc, acc_sc, **static)
    return kernel


# ---------------------------------------------------------------------------
# Wrapper
# ---------------------------------------------------------------------------

def _vmem_limit_bytes():
    """Per-generation VMEM limit: ~48 MiB usable on v7x (64 MiB physical), ~100 MiB on v5e/v6e."""
    cap = 64 * 1024 * 1024
    try:
        cap = int(pltpu.get_tpu_info().vmem_capacity_bytes)
    except Exception:
        pass
    return max(32 * 1024 * 1024, min(cap - 16 * 1024 * 1024, 100 * 1024 * 1024))


def scaled_dot_product_attention(q, k, v, mask=None, *, temperature, dropout=0.0,
                                 seed=0, return_attn=True, block_q=None, block_b=None,
                                 block_k=None, use_flash=None, mxu_dtype="auto",
                                 out_dtype=None, attn_dtype=None):
    """Returns (output, attn) with the same semantics as the PyTorch module.

    return_attn=False is the fast path (skips the B*Lq*Lk attn HBM writeback and enables
    the flash/online-softmax variant for long Lk; attn slot returns None).
    mxu_dtype="auto" feeds the MXU in bf16 for f32 inputs (f32 accumulation); pass
    mxu_dtype=None for exact-f32 feeds. attn_dtype/out_dtype allow e.g. bf16 writebacks.
    """
    B, Lq, D = q.shape
    Bk, Lk, Dk = k.shape
    Bv, Lkv, Dv = v.shape
    assert B == Bk == Bv and D == Dk and Lk == Lkv
    if mask is not None:
        assert mask.shape == (B, Lq, Lk)

    out_dtype = q.dtype if out_dtype is None else out_dtype
    attn_dtype = q.dtype if attn_dtype is None else attn_dtype
    if mxu_dtype == "auto":
        mxu_dtype = jnp.bfloat16 if q.dtype == jnp.float32 else None

    # Mask: 1-byte dtypes (bool / int8 / uint8) are passed straight through — no extra
    # HBM read+write conversion pass; wider dtypes are converted to int8 once.
    mask_in = None
    if mask is not None:
        mask_in = mask if mask.dtype.itemsize == 1 else (mask != 0).astype(jnp.int8)

    vmem_limit = _vmem_limit_bytes()
    budget = int(vmem_limit * 0.8)
    isz = lambda a: a.dtype.itemsize
    o_isz = np.dtype(out_dtype).itemsize
    a_isz = np.dtype(attn_dtype).itemsize

    static = dict(inv_temperature=1.0 / float(temperature), dropout_p=float(dropout),
                  seed=int(seed), mxu_dtype=mxu_dtype)

    cost = pl.CostEstimate(
        flops=int(2 * B * Lq * Lk * (D + Dv)),
        transcendentals=int(B * Lq * Lk),
        bytes_accessed=int(q.size * isz(q) + k.size * isz(k) + v.size * isz(v)
                           + (mask_in.size if mask_in is not None else 0)
                           + B * Lq * Dv * o_isz
                           + (B * Lq * Lk * a_isz if return_attn else 0)),
    )

    if use_flash is None:
        use_flash = (not return_attn) and Lk >= 1024
    use_flash = bool(use_flash) and not return_attn

    if use_flash:
        # ---- flash / online-softmax path: VMEM is O(block_q*block_k), Lk tiled ----
        def flash_step_bytes(tq, tk):
            io = (tq * D * isz(q) + tk * D * isz(k) + tk * Dv * isz(v)
                  + (tq * tk if mask_in is not None else 0) + tq * Dv * o_isz)
            live = 3 * tq * tk * 4 + tq * (Dv + 2) * 4
            return 2 * io + live

        if block_q is None:
            cands = [c for c in (512, 256, 128) if Lq % c == 0]
            block_q = (next((c for c in cands if flash_step_bytes(c, 128) <= budget),
                            cands[-1]) if cands else Lq)
        if block_k is None:
            cands = [c for c in (512, 256, 128) if Lk % c == 0]
            block_k = (next((c for c in cands if flash_step_bytes(block_q, c) <= budget),
                            cands[-1]) if cands else Lk)
        assert Lq % block_q == 0 and Lk % block_k == 0
        nq, nk = Lq // block_q, Lk // block_k

        in_specs = [
            pl.BlockSpec((1, block_q, D), lambda b, i, j: (b, i, 0)),
            pl.BlockSpec((1, block_k, D), lambda b, i, j: (b, j, 0)),
            pl.BlockSpec((1, block_k, Dv), lambda b, i, j: (b, j, 0)),
        ]
        inputs = [q, k, v]
        if mask_in is not None:
            inputs.append(mask_in)
            in_specs.append(pl.BlockSpec((1, block_q, block_k), lambda b, i, j: (b, i, j)))

        kernel = _make_flash_kernel(mask_in is not None, **static)
        out = pl.pallas_call(
            kernel,
            out_shape=jax.ShapeDtypeStruct((B, Lq, Dv), out_dtype),
            grid=(B, nq, nk),
            in_specs=in_specs,
            out_specs=pl.BlockSpec((1, block_q, Dv), lambda b, i, j: (b, i, 0)),
            scratch_shapes=[pltpu.VMEM((block_q, 1), jnp.float32),
                            pltpu.VMEM((block_q, 1), jnp.float32),
                            pltpu.VMEM((block_q, Dv), jnp.float32)],
            compiler_params=pltpu.CompilerParams(
                dimension_semantics=("parallel", "parallel", "arbitrary"),
                vmem_limit_bytes=vmem_limit),
            cost_estimate=cost,
        )(*inputs)
        return out, None

    # ---- non-flash path: K/V resident across Lk, (block_b, block_q) query tile ----
    def step_bytes(tb, tq):
        io = (tb * tq * D * isz(q) + tb * Lk * D * isz(k) + tb * Lk * Dv * isz(v)
              + (tb * tq * Lk if mask_in is not None else 0)
              + tb * tq * Dv * o_isz
              + (tb * tq * Lk * a_isz if return_attn else 0))
        live = 3 * tb * tq * Lk * 4 + 2 * tb * tq * max(D, Dv) * 4
        return 2 * io + live              # x2: BlockSpec double-buffering

    if block_q is None:
        cands = [c for c in (1024, 512, 256, 128) if Lq % c == 0]
        if cands:
            block_q = next((c for c in cands if step_bytes(1, c) <= budget), cands[-1])
        else:
            block_q = Lq
    assert Lq % block_q == 0
    nq = Lq // block_q

    if block_b is None:
        block_b = 1
        # Tiny TTS-style tiles: block several batch items per grid step to amortize the
        # per-step overhead and present larger, more lane-dense stores.
        if B > 1 and Lq <= 256 and Lk <= 2048:
            for tb in range(min(B, 16), 1, -1):
                if B % tb == 0 and step_bytes(tb, block_q) <= budget:
                    block_b = tb
                    break
    assert B % block_b == 0
    nb = B // block_b

    kernel = _make_sdpa_kernel(mask_in is not None, return_attn, **static)

    in_specs = [
        pl.BlockSpec((block_b, block_q, D), lambda b, i: (b, i, 0)),
        pl.BlockSpec((block_b, Lk, D), lambda b, i: (b, 0, 0)),
        pl.BlockSpec((block_b, Lk, Dv), lambda b, i: (b, 0, 0)),
    ]
    inputs = [q, k, v]
    if mask_in is not None:
        inputs.append(mask_in)
        in_specs.append(pl.BlockSpec((block_b, block_q, Lk), lambda b, i: (b, i, 0)))

    out_shapes = [jax.ShapeDtypeStruct((B, Lq, Dv), out_dtype)]
    out_specs = [pl.BlockSpec((block_b, block_q, Dv), lambda b, i: (b, i, 0))]
    if return_attn:
        out_shapes.append(jax.ShapeDtypeStruct((B, Lq, Lk), attn_dtype))
        out_specs.append(pl.BlockSpec((block_b, block_q, Lk), lambda b, i: (b, i, 0)))

    results = pl.pallas_call(
        kernel,
        out_shape=tuple(out_shapes),
        grid=(nb, nq),
        in_specs=in_specs,
        out_specs=tuple(out_specs),
        compiler_params=pltpu.CompilerParams(
            dimension_semantics=("parallel", "parallel"),
            vmem_limit_bytes=vmem_limit),
        cost_estimate=cost,
    )(*inputs)

    if return_attn:
        return results[0], results[1]
    return results[0], None


# ---------------------------------------------------------------------------
# Reference + self-test
# ---------------------------------------------------------------------------

def _reference(q, k, v, mask, temperature):
    hi = lax.Precision.HIGHEST
    attn = jnp.einsum("bqd,bkd->bqk", q, k, precision=hi) / temperature
    if mask is not None:
        attn = jnp.where(mask != 0, -jnp.inf, attn)
    attn = jax.nn.softmax(attn, axis=2)
    out = jnp.einsum("bqk,bkd->bqd", attn, v, precision=hi)
    return out, attn


if __name__ == "__main__":
    # Small shapes consistent with the module's forward (bmm over 3-D tensors).
    B, Lq, Lk, D, Dv = 2, 8, 8, 32, 32
    temperature = float(D) ** 0.5
    dropout = 0.0  # nn.Dropout in eval / p=0 is identity; kernel also supports p>0.
    # TODO(synk): torch nn.Dropout RNG parity is not reproducible; dropout uses the TPU HW PRNG.

    key = jax.random.PRNGKey(0)
    kq, kk, kv, km = jax.random.split(key, 4)
    q = jax.random.normal(kq, (B, Lq, D), jnp.float32)
    k = jax.random.normal(kk, (B, Lk, D), jnp.float32)
    v = jax.random.normal(kv, (B, Lk, Dv), jnp.float32)
    mask = jax.random.uniform(km, (B, Lq, Lk)) < 0.25
    mask = mask.at[:, :, 0].set(False)  # keep every row at least partially unmasked

    # 1) No-mask path, default bf16 MXU feeds (f32 accumulation).
    out, attn = scaled_dot_product_attention(
        q, k, v, mask=None, temperature=temperature, dropout=dropout)
    jax.block_until_ready((out, attn))
    out_ref, attn_ref = _reference(q, k, v, None, temperature)
    assert jnp.allclose(out, out_ref, atol=2e-2, rtol=2e-2)
    assert jnp.allclose(attn, attn_ref, atol=2e-2, rtol=2e-2)

    # 2) Masked path (bool mask passed straight through), exact f32 MXU feeds.
    out_m, attn_m = scaled_dot_product_attention(
        q, k, v, mask=mask, temperature=temperature, dropout=dropout, mxu_dtype=None)
    jax.block_until_ready((out_m, attn_m))
    out_mr, attn_mr = _reference(q, k, v, mask, temperature)
    assert jnp.allclose(out_m, out_mr, atol=1e-3, rtol=1e-3)
    assert jnp.allclose(attn_m, attn_mr, atol=1e-3, rtol=1e-3)

    # 3) Flash / online-softmax fast path (return_attn=False), masked, Lk tiled in 2 blocks.
    B2, Lq2, Lk2, D2, Dv2 = 2, 128, 256, 32, 32
    k2q, k2k, k2v, k2m = jax.random.split(jax.random.PRNGKey(1), 4)
    q2 = jax.random.normal(k2q, (B2, Lq2, D2), jnp.float32)
    k2 = jax.random.normal(k2k, (B2, Lk2, D2), jnp.float32)
    v2 = jax.random.normal(k2v, (B2, Lk2, Dv2), jnp.float32)
    mask2 = jax.random.uniform(k2m, (B2, Lq2, Lk2)) < 0.25
    mask2 = mask2.at[:, :, 0].set(False)
    temperature2 = float(D2) ** 0.5
    out_f, none_attn = scaled_dot_product_attention(
        q2, k2, v2, mask=mask2, temperature=temperature2, dropout=0.0,
        return_attn=False, use_flash=True, block_k=128)
    jax.block_until_ready(out_f)
    assert none_attn is None
    out_fr, _ = _reference(q2, k2, v2, mask2, temperature2)
    assert jnp.allclose(out_f, out_fr, atol=2e-2, rtol=2e-2)

    print("KERNEL_OK")
</pallas_src>

<mosaic_0001>
module attributes {stable_mosaic.version = 11 : i64} {
  func.func @kernel(%arg0: i32, %arg1: i32, %arg2: memref<2x8x32xf32, #tpu.memory_space<vmem>>, %arg3: memref<2x8x32xf32, #tpu.memory_space<vmem>>, %arg4: memref<2x8x32xf32, #tpu.memory_space<vmem>>, %arg5: memref<2x8x32xf32, #tpu.memory_space<vmem>>, %arg6: memref<2x8x8xf32, #tpu.memory_space<vmem>>) attributes {dimension_semantics = [#tpu.dimension_semantics<parallel>, #tpu.dimension_semantics<parallel>], iteration_bounds = array<i64: 1, 1>, scalar_prefetch = 0 : i64, scratch_operands = 0 : i64, tpu.core_type = #tpu.core_type<tc>, window_params = [{transform_indices = @transform_0, window_bounds = array<i64: 2, 8, 32>}, {transform_indices = @transform_1, window_bounds = array<i64: 2, 8, 32>}, {transform_indices = @transform_2, window_bounds = array<i64: 2, 8, 32>}, {transform_indices = @transform_3, window_bounds = array<i64: 2, 8, 32>}, {transform_indices = @transform_4, window_bounds = array<i64: 2, 8, 8>}]} {
    %c0 = arith.constant 0 : index
    %c0_0 = arith.constant 0 : index
    %c0_1 = arith.constant 0 : index
    %0 = vector.load %arg2[%c0, %c0_0, %c0_1] : memref<2x8x32xf32, #tpu.memory_space<vmem>>, vector<2x8x32xf32>
    %c0_2 = arith.constant 0 : index
    %c0_3 = arith.constant 0 : index
    %c0_4 = arith.constant 0 : index
    %1 = vector.load %arg3[%c0_2, %c0_3, %c0_4] : memref<2x8x32xf32, #tpu.memory_space<vmem>>, vector<2x8x32xf32>
    %c0_5 = arith.constant 0 : index
    %c0_6 = arith.constant 0 : index
    %c0_7 = arith.constant 0 : index
    %2 = vector.load %arg4[%c0_5, %c0_6, %c0_7] : memref<2x8x32xf32, #tpu.memory_space<vmem>>, vector<2x8x32xf32>
    %cst = arith.constant 0.176776692 : f32
    %3 = vector.broadcast %cst : f32 to vector<2x8x32xf32>
    %4 = arith.mulf %0, %3 : vector<2x8x32xf32>
    %5 = arith.truncf %4 : vector<2x8x32xf32> to vector<2x8x32xbf16>
    %6 = arith.truncf %1 : vector<2x8x32xf32> to vector<2x8x32xbf16>
    %7 = arith.truncf %2 : vector<2x8x32xf32> to vector<2x8x32xbf16>
    "tpu.trace_start"() <{level = 10 : i32, message = "bqd,bkd->bqk"}> : () -> ()
    %cst_8 = arith.constant dense<0.000000e+00> : vector<2x8x8xf32>
    %8 = tpu.matmul %5, %6, %cst_8 {dimension_numbers = #tpu.dot_dimension_numbers<[2], [2], [1], [1], [0, 0, 0, 1, 1, 1], [0], [0]>} : vector<2x8x32xbf16>, vector<2x8x32xbf16>, vector<2x8x8xf32> -> vector<2x8x8xf32>
    "tpu.trace_stop"() : () -> ()
    %cst_9 = arith.constant dense<0xFF800000> : vector<2x8xf32>
    %9 = vector.multi_reduction <maximumf>, %8, %cst_9 [2] : vector<2x8x8xf32> to vector<2x8xf32>
    %10 = vector.shape_cast %9 : vector<2x8xf32> to vector<2x8x1xf32>
    %11 = vector.broadcast %10 : vector<2x8x1xf32> to vector<2x8x8xf32>
    %12 = arith.subf %8, %11 : vector<2x8x8xf32>
    %13 = math.exp %12 : vector<2x8x8xf32>
    %cst_10 = arith.constant dense<0.000000e+00> : vector<2x8xf32>
    %14 = vector.multi_reduction <add>, %13, %cst_10 [2] : vector<2x8x8xf32> to vector<2x8xf32>
    %15 = vector.shape_cast %14 : vector<2x8xf32> to vector<2x8x1xf32>
    %16 = vector.broadcast %15 : vector<2x8x1xf32> to vector<2x8x8xf32>
    %17 = arith.divf %13, %16 : vector<2x8x8xf32>
    %c0_11 = arith.constant 0 : index
    %c0_12 = arith.constant 0 : index
    %c0_13 = arith.constant 0 : index
    %18 = vector.load %arg6[%c0_11, %c0_12, %c0_13] : memref<2x8x8xf32, #tpu.memory_space<vmem>>, vector<2x8x8xf32>
    tpu.vector_store %arg6[%c0_11, %c0_12, %c0_13], %17 {strides = array<i32>} : memref<2x8x8xf32, #tpu.memory_space<vmem>>, vector<2x8x8xf32>,
    %19 = arith.truncf %17 : vector<2x8x8xf32> to vector<2x8x8xbf16>
    "tpu.trace_start"() <{level = 10 : i32, message = "bqk,bkd->bqd"}> : () -> ()
    %cst_14 = arith.constant dense<0.000000e+00> : vector<2x8x32xf32>
    %20 = tpu.matmul %19, %7, %cst_14 {dimension_numbers = #tpu.dot_dimension_numbers<[2], [1], [1], [2], [0, 0, 0, 1, 1, 2], [0], [0]>} : vector<2x8x8xbf16>, vector<2x8x32xbf16>, vector<2x8x32xf32> -> vector<2x8x32xf32>
    "tpu.trace_stop"() : () -> ()
    %c0_15 = arith.constant 0 : index
    %c0_16 = arith.constant 0 : index
    %c0_17 = arith.constant 0 : index
    %21 = vector.load %arg5[%c0_15, %c0_16, %c0_17] : memref<2x8x32xf32, #tpu.memory_space<vmem>>, vector<2x8x32xf32>
    tpu.vector_store %arg5[%c0_15, %c0_16, %c0_17], %20 {strides = array<i32>} : memref<2x8x32xf32, #tpu.memory_space<vmem>>, vector<2x8x32xf32>,
    return
  }
  func.func @transform_0(%arg0: i32, %arg1: i32) -> (i32, i32, i32) {
    %c0_i32 = arith.constant 0 : i32
    %c0_i32_0 = arith.constant 0 : i32
    return %arg0, %arg1, %c0_i32 : i32, i32, i32
  }
  func.func @transform_1(%arg0: i32, %arg1: i32) -> (i32, i32, i32) {
    %c0_i32 = arith.constant 0 : i32
    %c0_i32_0 = arith.constant 0 : i32
    %c0_i32_1 = arith.constant 0 : i32
    return %arg0, %c0_i32, %c0_i32_0 : i32, i32, i32
  }
  func.func @transform_2(%arg0: i32, %arg1: i32) -> (i32, i32, i32) {
    %c0_i32 = arith.constant 0 : i32
    %c0_i32_0 = arith.constant 0 : i32
    %c0_i32_1 = arith.constant 0 : i32
    return %arg0, %c0_i32, %c0_i32_0 : i32, i32, i32
  }
  func.func @transform_3(%arg0: i32, %arg1: i32) -> (i32, i32, i32) {
    %c0_i32 = arith.constant 0 : i32
    %c0_i32_0 = arith.constant 0 : i32
    return %arg0, %arg1, %c0_i32 : i32, i32, i32
  }
  func.func @transform_4(%arg0: i32, %arg1: i32) -> (i32, i32, i32) {
    %c0_i32 = arith.constant 0 : i32
    %c0_i32_0 = arith.constant 0 : i32
    return %arg0, %arg1, %c0_i32 : i32, i32, i32
  }
}

</mosaic_0001>

<llo_original>
// kernel: tpu_custom_call.1
$region0: #{tpu_custom_call.1}
  #allocation0 [shape = 'u32[]', space=smem, size = 0x4, offset = 0x4, fixed_abs, tag = 'smem constant byte address 0x4 - core index']
  #allocation1 [shape = 'u32[144,128]{1,0:T(1,128)}', space=vmem, size = 0x12000, scoped, tag = 'internal scratch']
  %s0 = inlined_call_operand.hbm [shape: f32[2,8,32], index: 0, kind: input, shape index: {}]
  %s1 = inlined_call_operand.hbm [shape: f32[2,8,32], index: 1, kind: input, shape index: {}]
  %s2 = inlined_call_operand.hbm [shape: f32[2,8,32], index: 2, kind: input, shape index: {}]
  %s3 = inlined_call_operand.hbm [shape: f32[2,8,32], index: 3, kind: output, shape index: {0}]
  %s4 = inlined_call_operand.hbm [shape: f32[2,8,8], index: 4, kind: output, shape index: {1}]
  %5 = xla_tuple %s3, %s4
  %s6 = sld [smem:[#allocation0]]
  $region42: #{tpu_custom_call.1} parent=0
    _
  %s8 = ssub.s32 1, %s6
  %s9 = scalar_select 0, %s8, %s6
  $region1: #{tpu_custom_call.1} parent=0
    #allocation2 [shape = 'u8[8192]{0}', space=vmem, size = 0x2000, scoped, tag = 'input window, operand 0, single buffered']
    #allocation3 [shape = 's32[1]{0}', space=sflag, size = 0x4, scoped, tag = 'scoped memory for tpu_custom_call.1']
    #allocation4 [shape = 's32[1]{0}', space=sflag, size = 0x4, scoped, tag = 'scoped memory for tpu_custom_call.1']
    #allocation5 [shape = 'u8[8192]{0}', space=vmem, size = 0x2000, scoped, tag = 'input window, operand 1, single buffered']
    #allocation6 [shape = 's32[1]{0}', space=sflag, size = 0x4, scoped, tag = 'scoped memory for tpu_custom_call.1']
    #allocation7 [shape = 'u8[8192]{0}', space=vmem, size = 0x2000, scoped, tag = 'input window, operand 2, single buffered']
    #allocation8 [shape = 'u8[8192]{0}', space=vmem, size = 0x2000, scoped, tag = 'output window, operand 0, single buffered']
    #allocation9 [shape = 'u8[8192]{0}', space=vmem, size = 0x2000, scoped, tag = 'output window, operand 1, single buffered']
    #allocation10 [shape = 's32[1]{0}', space=sflag, size = 0x4, scoped, tag = 'scoped memory for tpu_custom_call.1']
    %10 = vsyncpa [#allocation3], 0
    %11 = vsyncpa [#allocation6], 0
    %12 = vsyncpa [#allocation4], 0
    %13 = vsyncpa [#allocation10], 0
    // Predicated region
    $region2: #{tpu_custom_call.1} parent=1 // pred_check
      _
    $region3: #{tpu_custom_call.1} parent=1 // pred_check_branch
      %15 = sbr.rel (0) target = $region5
    $region4: #{tpu_custom_call.1} parent=1 // pred_region
      %s17 = ssub.s32 256, 256
      %18 = vsyncadd [#allocation3], %s17
      %s19 = sshll.u32 [#allocation2], 4
      %s20 = int_to_ptr.vmem [resolvable:$true] %s19
      %25 = dma.hbm_to_vmem [thread:$0]  %s0, 256, %s20, [#allocation3], 128, 128, 8
    $region5: #{tpu_custom_call.1} parent=1 // pred_fallthru
      _
    // Predicated region
    $region6: #{tpu_custom_call.1} parent=1 // pred_check
      _
    $region7: #{tpu_custom_call.1} parent=1 // pred_check_branch
      %27 = sbr.rel (0) target = $region9
    $region8: #{tpu_custom_call.1} parent=1 // pred_region
      %s29 = ssub.s32 256, 256
      %30 = vsyncadd [#allocation6], %s29
      %s31 = sshll.u32 [#allocation5], 4
      %s32 = int_to_ptr.vmem [resolvable:$true] %s31
      %37 = dma.hbm_to_vmem [thread:$0]  %s1, 256, %s32, [#allocation6], 128, 128, 8
    $region9: #{tpu_custom_call.1} parent=1 // pred_fallthru
      _
    // Predicated region
    $region10: #{tpu_custom_call.1} parent=1 // pred_check
      _
    $region11: #{tpu_custom_call.1} parent=1 // pred_check_branch
      %39 = sbr.rel (0) target = $region13
    $region12: #{tpu_custom_call.1} parent=1 // pred_region
      %s41 = ssub.s32 256, 256
      %42 = vsyncadd [#allocation6], %s41
      %s43 = sshll.u32 [#allocation7], 4
      %s44 = int_to_ptr.vmem [resolvable:$true] %s43
      %49 = dma.hbm_to_vmem [thread:$0]  %s2, 256, %s44, [#allocation6], 128, 128, 8
    $region13: #{tpu_custom_call.1} parent=1 // pred_fallthru
      _
    // Predicated region
    $region14: #{tpu_custom_call.1} parent=1 // pred_check
      _
    $region15: #{tpu_custom_call.1} parent=1 // pred_check_branch
      %51 = sbr.rel (0) target = $region17
    $region16: #{tpu_custom_call.1} parent=1 // pred_region
      %52 = dma.done [#allocation3], 256
    $region17: #{tpu_custom_call.1} parent=1 // pred_fallthru
      _
    // Predicated region
    $region18: #{tpu_custom_call.1} parent=1 // pred_check
      _
    $region19: #{tpu_custom_call.1} parent=1 // pred_check_branch
      %54 = sbr.rel (0) target = $region21
    $region20: #{tpu_custom_call.1} parent=1 // pred_region
      %55 = dma.done [#allocation6], 256
    $region21: #{tpu_custom_call.1} parent=1 // pred_fallthru
      _
    // Predicated region
    $region22: #{tpu_custom_call.1} parent=1 // pred_check
      _
    $region23: #{tpu_custom_call.1} parent=1 // pred_check_branch
      %57 = sbr.rel (0) target = $region25
    $region24: #{tpu_custom_call.1} parent=1 // pred_region
      %58 = dma.done [#allocation6], 256
    $region25: #{tpu_custom_call.1} parent=1 // pred_fallthru
      _
    %v60 = vld [vmem:[#allocation2] sm:$0xff]
    %v61 = vld [vmem:[#allocation2 + $0x8] sm:$0xff]
    %v62 = vld [vmem:[#allocation5] sm:$0xff]
    %v63 = vld [vmem:[#allocation5 + $0x8] sm:$0xff]
    %v64 = vld [vmem:[#allocation7] sm:$0xff]
    %v65 = vld [vmem:[#allocation7 + $0x8] sm:$0xff]
    %v66 = vmul.f32 %v60, 0.17677669
    %v67 = vmul.f32 %v61, 0.17677669
    %v68 = vpack.c.bf16 %v66, %v66
    %v69 = vpack.c.bf16 %v67, %v67
    %v70 = vpack.c.bf16 %v62, %v62
    %v71 = vpack.c.bf16 %v63, %v63
    %v72 = vpack.c.bf16 %v64, %v64
    %v73 = vpack.c.bf16 %v65, %v65
    %vm74 = vcmask 261120
    %v76 = vsel %vm74, %v68, 0
    %v79 = vsel %vm74, %v70, 0
    %81 = vmatprep.subr.bf16.mxu0 0
    %82 = vmatpush1.bf16.xpose.msra.mxu0 0
    %83 = vmatprep.subr.bf16.mxu0 0
    %84 = vmatpush1.bf16.xpose.msra.mxu0 0
    %85 = vmatprep.subr.bf16.mxu0 0
    %86 = vmatpush1.bf16.xpose.msra.mxu0 0
    %87 = vmatprep.subr.bf16.mxu0 0
    %88 = vmatpush1.bf16.xpose.msra.mxu0 0
    %89 = vmatprep.subr.bf16.mxu0 0
    %90 = vmatpush1.bf16.xpose.msra.mxu0 0
    %91 = vmatprep.subr.bf16.mxu0 0
    %92 = vmatpush1.bf16.xpose.msra.mxu0 0
    %93 = vmatprep.subr.bf16.mxu0 0
    %94 = vmatpush1.bf16.xpose.msra.mxu0 0
    %95 = vmatprep.subr.bf16.mxu0 0
    %96 = vmatpush1.bf16.xpose.msra.mxu0 %v79
    %97 = vmatprep.subr.bf16.mxu0 0
    %98 = vmatpush2.bf16.xpose.msra.mxu0 0
    %99 = vmatprep.subr.bf16.mxu0 0
    %100 = vmatpush2.bf16.xpose.msra.mxu0 0
    %101 = vmatprep.subr.bf16.mxu0 0
    %102 = vmatpush2.bf16.xpose.msra.mxu0 0
    %103 = vmatprep.subr.bf16.mxu0 0
    %104 = vmatpush2.bf16.xpose.msra.mxu0 0
    %105 = vmatprep.subr.bf16.mxu0 0
    %106 = vmatpush2.bf16.xpose.msra.mxu0 0
    %107 = vmatprep.subr.bf16.mxu0 0
    %108 = vmatpush2.bf16.xpose.msra.mxu0 0
    %109 = vmatprep.subr.bf16.mxu0 0
    %110 = vmatpush2.bf16.xpose.msra.mxu0 0
    %111 = vmatprep.subr.bf16.mxu0 0
    %112 = vmatpush2.bf16.xpose.msra.mxu0 0
    %113 = vmatprep.mubr.bf16.mxu0 0
    %114 = vmatmul.mubr.bf16.gmra.mxu0 %v76
    %v115 = vpop.f32.mrf.mxu0
    %v116 = vadd.f32 0.0, %v115
    %v117 = vpop.f32.mrf.mxu0
    %v118 = vpop.f32.mrf.mxu0
    %v119 = vpop.f32.mrf.mxu0
    %120 = vdwg.mxu0
    %v122 = vsel %vm74, %v69, 0
    %v125 = vsel %vm74, %v71, 0
    %127 = vmatprep.subr.bf16.mxu0 0
    %128 = vmatpush1.bf16.xpose.msra.mxu0 0
    %129 = vmatprep.subr.bf16.mxu0 0
    %130 = vmatpush1.bf16.xpose.msra.mxu0 0
    %131 = vmatprep.subr.bf16.mxu0 0
    %132 = vmatpush1.bf16.xpose.msra.mxu0 0
    %133 = vmatprep.subr.bf16.mxu0 0
    %134 = vmatpush1.bf16.xpose.msra.mxu0 0
    %135 = vmatprep.subr.bf16.mxu0 0
    %136 = vmatpush1.bf16.xpose.msra.mxu0 0
    %137 = vmatprep.subr.bf16.mxu0 0
    %138 = vmatpush1.bf16.xpose.msra.mxu0 0
    %139 = vmatprep.subr.bf16.mxu0 0
    %140 = vmatpush1.bf16.xpose.msra.mxu0 0
    %141 = vmatprep.subr.bf16.mxu0 0
    %142 = vmatpush1.bf16.xpose.msra.mxu0 %v125
    %143 = vmatprep.subr.bf16.mxu0 0
    %144 = vmatpush2.bf16.xpose.msra.mxu0 0
    %145 = vmatprep.subr.bf16.mxu0 0
    %146 = vmatpush2.bf16.xpose.msra.mxu0 0
    %147 = vmatprep.subr.bf16.mxu0 0
    %148 = vmatpush2.bf16.xpose.msra.mxu0 0
    %149 = vmatprep.subr.bf16.mxu0 0
    %150 = vmatpush2.bf16.xpose.msra.mxu0 0
    %151 = vmatprep.subr.bf16.mxu0 0
    %152 = vmatpush2.bf16.xpose.msra.mxu0 0
    %153 = vmatprep.subr.bf16.mxu0 0
    %154 = vmatpush2.bf16.xpose.msra.mxu0 0
    %155 = vmatprep.subr.bf16.mxu0 0
    %156 = vmatpush2.bf16.xpose.msra.mxu0 0
    %157 = vmatprep.subr.bf16.mxu0 0
    %158 = vmatpush2.bf16.xpose.msra.mxu0 0
    %159 = vmatprep.mubr.bf16.mxu0 0
    %160 = vmatmul.mubr.bf16.gmra.mxu0 %v122
    %v161 = vpop.f32.mrf.mxu0
    %v162 = vadd.f32 0.0, %v161
    %v163 = vpop.f32.mrf.mxu0
    %v164 = vpop.f32.mrf.mxu0
    %v165 = vpop.f32.mrf.mxu0
    %166 = vdwg.mxu0
    %vm167 = vcmask 64512
    %v168 = vsel %vm167, %v116, -inf
    %169 = vmax.xlane.f32.xlu0 %v168
    %v170 = vpop.xlane.xlu0 %169
    %v171 = vsel %vm167, %v162, -inf
    %172 = vmax.xlane.f32.xlu0 %v171
    %v173 = vpop.xlane.xlu0 %172
    %v174 = vsub.f32 %v116, %v170
    %v175 = vsub.f32 %v162, %v173
    %v176 = vmul.f32 %v174, 1.442695
    %v177 = vpow.pop %v176
    %v178 = vmul.f32 %v175, 1.442695
    %v179 = vpow.pop %v178
    %v180 = vsel %vm167, %v177, 0.0
    %181 = vadd.xlane.f32.xlu0 %v180
    %v182 = vpop.xlane.xlu0 %181
    %v183 = vsel %vm167, %v179, 0.0
    %184 = vadd.xlane.f32.xlu0 %v183
    %v185 = vpop.xlane.xlu0 %184
    %v186 = vrcp.pop %v182
    %v187 = vmul.f32 %v177, %v186
    %v188 = vrcp.pop %v185
    %v189 = vmul.f32 %v179, %v188
    %190 = vst.msk [vmem:[#allocation9] sm:$0xff] %vm167, %v187
    %191 = vst.msk [vmem:[#allocation9 + $0x8] sm:$0xff] %vm167, %v189
    %v192 = vpack.c.bf16 %v187, %v187
    %v193 = vpack.c.bf16 %v189, %v189
    %v195 = vsel %vm167, %v192, 0
    %vm197 = vcmask 1043456
    %v199 = vsel %vm197, %v72, 0
    %201 = vmatprep.subr.bf16.mxu0 0
    %202 = vmatpush1.bf16.msra.mxu0 0
    %203 = vmatprep.subr.bf16.mxu0 0
    %204 = vmatpush1.bf16.msra.mxu0 0
    %205 = vmatprep.subr.bf16.mxu0 0
    %206 = vmatpush1.bf16.msra.mxu0 0
    %207 = vmatprep.subr.bf16.mxu0 0
    %208 = vmatpush1.bf16.msra.mxu0 0
    %209 = vmatprep.subr.bf16.mxu0 0
    %210 = vmatpush1.bf16.msra.mxu0 0
    %211 = vmatprep.subr.bf16.mxu0 0
    %212 = vmatpush1.bf16.msra.mxu0 0
    %213 = vmatprep.subr.bf16.mxu0 0
    %214 = vmatpush1.bf16.msra.mxu0 0
    %215 = vmatprep.subr.bf16.mxu0 0
    %216 = vmatpush1.bf16.msra.mxu0 %v199
    %217 = vmatprep.subr.bf16.mxu0 0
    %218 = vmatpush2.bf16.msra.mxu0 0
    %219 = vmatprep.subr.bf16.mxu0 0
    %220 = vmatpush2.bf16.msra.mxu0 0
    %221 = vmatprep.subr.bf16.mxu0 0
    %222 = vmatpush2.bf16.msra.mxu0 0
    %223 = vmatprep.subr.bf16.mxu0 0
    %224 = vmatpush2.bf16.msra.mxu0 0
    %225 = vmatprep.subr.bf16.mxu0 0
    %226 = vmatpush2.bf16.msra.mxu0 0
    %227 = vmatprep.subr.bf16.mxu0 0
    %228 = vmatpush2.bf16.msra.mxu0 0
    %229 = vmatprep.subr.bf16.mxu0 0
    %230 = vmatpush2.bf16.msra.mxu0 0
    %231 = vmatprep.subr.bf16.mxu0 0
    %232 = vmatpush2.bf16.msra.mxu0 0
    %233 = vmatprep.mubr.bf16.mxu0 0
    %234 = vmatmul.mubr.bf16.gmra.mxu0 %v195
    %v235 = vpop.f32.mrf.mxu0
    %v236 = vadd.f32 0.0, %v235
    %v237 = vpop.f32.mrf.mxu0
    %v238 = vpop.f32.mrf.mxu0
    %v239 = vpop.f32.mrf.mxu0
    %240 = vdwg.mxu0
    %v242 = vsel %vm167, %v193, 0
    %v245 = vsel %vm197, %v73, 0
    %247 = vmatprep.subr.bf16.mxu0 0
    %248 = vmatpush1.bf16.msra.mxu0 0
    %249 = vmatprep.subr.bf16.mxu0 0
    %250 = vmatpush1.bf16.msra.mxu0 0
    %251 = vmatprep.subr.bf16.mxu0 0
    %252 = vmatpush1.bf16.msra.mxu0 0
    %253 = vmatprep.subr.bf16.mxu0 0
    %254 = vmatpush1.bf16.msra.mxu0 0
    %255 = vmatprep.subr.bf16.mxu0 0
    %256 = vmatpush1.bf16.msra.mxu0 0
    %257 = vmatprep.subr.bf16.mxu0 0
    %258 = vmatpush1.bf16.msra.mxu0 0
    %259 = vmatprep.subr.bf16.mxu0 0
    %260 = vmatpush1.bf16.msra.mxu0 0
    %261 = vmatprep.subr.bf16.mxu0 0
    %262 = vmatpush1.bf16.msra.mxu0 %v245
    %263 = vmatprep.subr.bf16.mxu0 0
    %264 = vmatpush2.bf16.msra.mxu0 0
    %265 = vmatprep.subr.bf16.mxu0 0
    %266 = vmatpush2.bf16.msra.mxu0 0
    %267 = vmatprep.subr.bf16.mxu0 0
    %268 = vmatpush2.bf16.msra.mxu0 0
    %269 = vmatprep.subr.bf16.mxu0 0
    %270 = vmatpush2.bf16.msra.mxu0 0
    %271 = vmatprep.subr.bf16.mxu0 0
    %272 = vmatpush2.bf16.msra.mxu0 0
    %273 = vmatprep.subr.bf16.mxu0 0
    %274 = vmatpush2.bf16.msra.mxu0 0
    %275 = vmatprep.subr.bf16.mxu0 0
    %276 = vmatpush2.bf16.msra.mxu0 0
    %277 = vmatprep.subr.bf16.mxu0 0
    %278 = vmatpush2.bf16.msra.mxu0 0
    %279 = vmatprep.mubr.bf16.mxu0 0
    %280 = vmatmul.mubr.bf16.gmra.mxu0 %v242
    %v281 = vpop.f32.mrf.mxu0
    %v282 = vadd.f32 0.0, %v281
    %v283 = vpop.f32.mrf.mxu0
    %v284 = vpop.f32.mrf.mxu0
    %v285 = vpop.f32.mrf.mxu0
    %286 = vdwg.mxu0
    %287 = vst.msk [vmem:[#allocation8] sm:$0xff] %vm74, %v236
    %288 = vst.msk [vmem:[#allocation8 + $0x8] sm:$0xff] %vm74, %v282
    // Predicated region
    $region26: #{tpu_custom_call.1} parent=1 // pred_check
      _
    $region27: #{tpu_custom_call.1} parent=1 // pred_check_branch
      %290 = sbr.rel (0) target = $region29
    $region28: #{tpu_custom_call.1} parent=1 // pred_region
      %s292 = ssub.s32 256, 256
      %293 = vsyncadd [#allocation4], %s292
      %s294 = sshll.u32 [#allocation8], 4
      %s295 = int_to_ptr.vmem [resolvable:$true] %s294
      %300 = dma.vmem_to_hbm [thread:$0]  %s295, 256, %s3, [#allocation4], 128, 128, 8
    $region29: #{tpu_custom_call.1} parent=1 // pred_fallthru
      _
    // Predicated region
    $region30: #{tpu_custom_call.1} parent=1 // pred_check
      _
    $region31: #{tpu_custom_call.1} parent=1 // pred_check_branch
      %302 = sbr.rel (0) target = $region33
    $region32: #{tpu_custom_call.1} parent=1 // pred_region
      %s304 = ssub.s32 256, 256
      %305 = vsyncadd [#allocation10], %s304
      %s306 = sshll.u32 [#allocation9], 4
      %s307 = int_to_ptr.vmem [resolvable:$true] %s306
      %312 = dma.vmem_to_hbm [thread:$0]  %s307, 256, %s4, [#allocation10], 128, 128, 8
    $region33: #{tpu_custom_call.1} parent=1 // pred_fallthru
      _
    // Predicated region
    $region34: #{tpu_custom_call.1} parent=1 // pred_check
      _
    $region35: #{tpu_custom_call.1} parent=1 // pred_check_branch
      %314 = sbr.rel (0) target = $region37
    $region36: #{tpu_custom_call.1} parent=1 // pred_region
      %315 = dma.done [#allocation4], 256
    $region37: #{tpu_custom_call.1} parent=1 // pred_fallthru
      _
    // Predicated region
    $region38: #{tpu_custom_call.1} parent=1 // pred_check
      _
    $region39: #{tpu_custom_call.1} parent=1 // pred_check_branch
      %317 = sbr.rel (0) target = $region41
    $region40: #{tpu_custom_call.1} parent=1 // pred_region
      %318 = dma.done [#allocation10], 256
    $region41: #{tpu_custom_call.1} parent=1 // pred_fallthru
      _
    %319 = vsyncpa [#allocation3], 1
    %320 = vsyncpa [#allocation6], 1
    %321 = vsyncpa [#allocation4], 1
    %322 = vsyncpa [#allocation10], 1

</llo_original>
